<compile_context>
chip_gen: v7x
topology: tpu7x:2x2x1
jax: 0.10.0
libtpu: 0.0.40
codegen_flags: <defaults>
</compile_context>

<pallas_src>
import functools

import jax
import jax.numpy as jnp
from jax import lax
from jax.experimental import pallas as pl
from jax.experimental.pallas import tpu as pltpu


# ------------------------------ helpers ------------------------------------

def _round_up(x, m):
    return (x + m - 1) // m * m


def _tpu_config():
    """(vmem_limit_bytes, row_tile) tuned per TPU generation."""
    try:
        phys = pltpu.get_tpu_info().vmem_capacity_bytes
    except Exception:
        phys = 64 * 1024 * 1024
    if phys >= 96 * 1024 * 1024:           # v5e / v6e: 128 MiB physical VMEM
        return 100 * 1024 * 1024, 512
    return 56 * 1024 * 1024, 256            # v7x: 64 MiB physical VMEM


# ------------------------------ kernel bodies ------------------------------

def _fused_kernel(a_ref, x_ref, w_ref, b_ref, p_ref, o_ref, *, n_valid):
    """Everything resident: out = P @ relu((A_hat^3 x) W + b), f32 math."""
    a = a_ref[...].astype(jnp.float32)       # A_hat stored bf16, upcast once
    h = x_ref[...]                           # f32, never re-rounded
    for _ in range(3):                       # SGConv K=3 propagation
        h = jnp.dot(a, h, preferred_element_type=jnp.float32)
    z = jnp.dot(h, w_ref[...], preferred_element_type=jnp.float32) + b_ref[...]
    r = jnp.maximum(z, 0.0)
    # padded node rows would contribute relu(b) != 0 -> mask them explicitly
    rows = lax.broadcasted_iota(jnp.int32, r.shape, 0)
    r = jnp.where(rows < n_valid, r, 0.0)
    o_ref[...] = jnp.dot(p_ref[...], r, preferred_element_type=jnp.float32)


def _prop_kernel(a_ref, h_ref, o_ref):
    """Fallback: one SGConv hop for a row tile, o[tile] = A_hat[tile,:] @ h."""
    o_ref[...] = jnp.dot(
        a_ref[...], h_ref[...], preferred_element_type=jnp.float32
    ).astype(o_ref.dtype)


def _finalize_kernel(a_ref, h_ref, w_ref, b_ref, p_ref, o_ref, *, n_valid, tm):
    """Fallback: hop3 + linear + bias + ReLU + mean-pool accumulation per tile."""
    i = pl.program_id(0)

    @pl.when(i == 0)
    def _():
        o_ref[...] = jnp.zeros_like(o_ref)

    h3 = jnp.dot(a_ref[...], h_ref[...], preferred_element_type=jnp.float32)
    z = jnp.dot(h3.astype(jnp.bfloat16), w_ref[...],
                preferred_element_type=jnp.float32) + b_ref[...]
    r = jnp.maximum(z, 0.0)
    rows = i * tm + lax.broadcasted_iota(jnp.int32, r.shape, 0)
    r = jnp.where(rows < n_valid, r, 0.0)          # mask padded node rows
    o_ref[...] += jnp.dot(p_ref[...], r.astype(jnp.bfloat16),
                          preferred_element_type=jnp.float32)


# -------------------------------- wrapper ----------------------------------

def subgcn_feature(a_hat, x, w, b, pool):
    """out[g] = mean_{i in graph g} relu((A_hat^3 x)_i @ W + b)."""
    N, C = x.shape
    H = w.shape[1]
    G = pool.shape[0]

    vmem_limit, row_tile = _tpu_config()

    Cp = _round_up(C, 128)
    Hp = _round_up(H, 128)
    Gp = _round_up(G, 8)

    # ---------------- fused, fully VMEM-resident path ----------------------
    Npf = _round_up(N, 128)
    fused_bytes = (
        6 * Npf * Npf                         # A_hat bf16 resident + f32 copy
        + 4 * Npf * (3 * Cp + 2 * Hp)         # x / hop temps / pre-post ReLU
        + 4 * Cp * Hp + 4 * Gp * Npf + 8 * Gp * Hp
    )
    if fused_bytes <= int(0.8 * vmem_limit):
        Np = Npf
        # NOTE: for production, build A_hat padded & bf16 upstream to avoid
        # this extra O(N^2) cast/pad pass on every invocation.
        a16 = jnp.pad(a_hat.astype(jnp.bfloat16), ((0, Np - N), (0, Np - N)))
        x32 = jnp.pad(x.astype(jnp.float32), ((0, Np - N), (0, Cp - C)))
        w32 = jnp.pad(w.astype(jnp.float32), ((0, Cp - C), (0, Hp - H)))
        b32 = jnp.pad(b.astype(jnp.float32), (0, Hp - H)).reshape(1, Hp)
        p32 = jnp.pad(pool.astype(jnp.float32), ((0, Gp - G), (0, Np - N)))

        out = pl.pallas_call(
            functools.partial(_fused_kernel, n_valid=N),
            out_shape=jax.ShapeDtypeStruct((Gp, Hp), jnp.float32),
            compiler_params=pltpu.CompilerParams(vmem_limit_bytes=vmem_limit),
        )(a16, x32, w32, b32, p32)
        return out[:G, :H]

    # ---------------- tiled fallback (A_hat too big for VMEM) --------------
    tm = row_tile
    Np = _round_up(N, tm)
    n_tiles = Np // tm

    a16 = jnp.pad(a_hat.astype(jnp.bfloat16), ((0, Np - N), (0, Np - N)))
    x16 = jnp.pad(x.astype(jnp.bfloat16), ((0, Np - N), (0, Cp - C)))
    w16 = jnp.pad(w.astype(jnp.bfloat16), ((0, Cp - C), (0, Hp - H)))
    p16 = jnp.pad(pool.astype(jnp.bfloat16), ((0, Gp - G), (0, Np - N)))
    b32 = jnp.pad(b.astype(jnp.float32), (0, Hp - H)).reshape(1, Hp)

    # hops 1..2: row-tile grid, megacore-parallel, pipelined A_hat tiles
    prop = pl.pallas_call(
        _prop_kernel,
        out_shape=jax.ShapeDtypeStruct((Np, Cp), jnp.bfloat16),
        grid_spec=pltpu.PrefetchScalarGridSpec(
            num_scalar_prefetch=0,
            grid=(n_tiles,),
            in_specs=[
                pl.BlockSpec((tm, Np), lambda i: (i, 0)),   # A_hat row tile
                pl.BlockSpec((Np, Cp), lambda i: (0, 0)),   # h: resident
            ],
            out_specs=pl.BlockSpec((tm, Cp), lambda i: (i, 0)),
        ),
        compiler_params=pltpu.CompilerParams(
            dimension_semantics=("parallel",), vmem_limit_bytes=vmem_limit),
    )
    h = x16
    for _ in range(2):
        h = prop(a16, h)

    # hop 3 + linear + ReLU + mean-pool, accumulated across row tiles
    out = pl.pallas_call(
        functools.partial(_finalize_kernel, n_valid=N, tm=tm),
        out_shape=jax.ShapeDtypeStruct((Gp, Hp), jnp.float32),
        grid_spec=pltpu.PrefetchScalarGridSpec(
            num_scalar_prefetch=0,
            grid=(n_tiles,),
            in_specs=[
                pl.BlockSpec((tm, Np), lambda i: (i, 0)),   # A_hat row tile
                pl.BlockSpec((Np, Cp), lambda i: (0, 0)),   # h2 (resident)
                pl.BlockSpec((Cp, Hp), lambda i: (0, 0)),   # W (resident)
                pl.BlockSpec((1, Hp), lambda i: (0, 0)),    # bias (resident)
                pl.BlockSpec((Gp, tm), lambda i: (0, i)),   # pool columns
            ],
            out_specs=pl.BlockSpec((Gp, Hp), lambda i: (0, 0)),  # accumulator
        ),
        compiler_params=pltpu.CompilerParams(
            dimension_semantics=("arbitrary",), vmem_limit_bytes=vmem_limit),
    )(a16, h, w16, b32, p16)
    return out[:G, :H]


# ------------------------- plain-JAX glue (setup only) ----------------------

def build_normalized_adjacency(edge_index, num_nodes):
    """gcn_norm with self loops: D^-1/2 (A + I) D^-1/2, densified."""
    src, dst = edge_index
    a = jnp.zeros((num_nodes, num_nodes), jnp.float32)
    a = a.at[dst, src].add(1.0)                      # row = target, col = source
    a = a + jnp.eye(num_nodes, dtype=jnp.float32)    # add self loops
    deg = a.sum(axis=1)
    d_inv_sqrt = jnp.where(deg > 0, 1.0 / jnp.sqrt(deg), 0.0)
    return d_inv_sqrt[:, None] * a * d_inv_sqrt[None, :]


def build_pool_matrix(batch, num_graphs):
    """P[g, i] = 1/|graph g| if batch[i] == g else 0  (global mean pool)."""
    onehot = (batch[None, :] == jnp.arange(num_graphs)[:, None]).astype(jnp.float32)
    counts = onehot.sum(axis=1, keepdims=True)
    return onehot / jnp.maximum(counts, 1.0)


if __name__ == "__main__":
    N, C, H, G = 256, 16, 64, 4          # nodes, c_in, hidden_size, graphs in batch
    nodes_per_graph = N // G

    # Deterministic graph: an undirected ring inside each of the G subgraphs.
    srcs, dsts = [], []
    for g in range(G):
        off = g * nodes_per_graph
        for i in range(nodes_per_graph):
            j = (i + 1) % nodes_per_graph
            srcs += [off + i, off + j]
            dsts += [off + j, off + i]
    edge_index = jnp.array([srcs, dsts], dtype=jnp.int32)
    batch = jnp.repeat(jnp.arange(G, dtype=jnp.int32), nodes_per_graph)

    # Deterministic parameters / node features.
    key = jax.random.PRNGKey(0)
    kx, kw, kb = jax.random.split(key, 3)
    x = jax.random.normal(kx, (N, C), jnp.float32)
    w = jax.random.normal(kw, (C, H), jnp.float32) / jnp.sqrt(C)   # lin weight (C,H)
    b = jax.random.normal(kb, (H,), jnp.float32) * 0.01            # lin bias

    a_hat = build_normalized_adjacency(edge_index, N)
    pool = build_pool_matrix(batch, G)

    out = jax.block_until_ready(jax.jit(subgcn_feature)(a_hat, x, w, b, pool))

    # Matched reference: only A_hat rounded to bf16, everything else f32.
    a_rounded = a_hat.astype(jnp.bfloat16).astype(jnp.float32)
    hm = x
    for _ in range(3):
        hm = a_rounded @ hm
    ref_matched = pool @ jnp.maximum(hm @ w + b, 0.0)

    # Pure-f32 reference (module semantics).
    hf = x
    for _ in range(3):
        hf = a_hat @ hf
    ref32 = pool @ jnp.maximum(hf @ w + b, 0.0)

    assert out.shape == (G, H)
    assert jnp.allclose(out, ref_matched, atol=2e-2, rtol=2e-2), \
        float(jnp.max(jnp.abs(out - ref_matched)))
    assert jnp.allclose(out, ref32, atol=5e-2, rtol=5e-2), \
        float(jnp.max(jnp.abs(out - ref32)))

    print("KERNEL_OK")
</pallas_src>

<mosaic_0001>
module attributes {stable_mosaic.version = 11 : i64} {
  func.func @_fused_kernel(%arg0: memref<256x256xbf16, #tpu.memory_space<vmem>>, %arg1: memref<256x128xf32, #tpu.memory_space<vmem>>, %arg2: memref<128x128xf32, #tpu.memory_space<vmem>>, %arg3: memref<1x128xf32, #tpu.memory_space<vmem>>, %arg4: memref<8x256xf32, #tpu.memory_space<vmem>>, %arg5: memref<8x128xf32, #tpu.memory_space<vmem>>) attributes {dimension_semantics = [], scalar_prefetch = 0 : i64, scratch_operands = 0 : i64, tpu.core_type = #tpu.core_type<tc>} {
    %c0 = arith.constant 0 : index
    %c0_0 = arith.constant 0 : index
    %0 = vector.load %arg0[%c0, %c0_0] : memref<256x256xbf16, #tpu.memory_space<vmem>>, vector<256x256xbf16>
    %1 = arith.extf %0 : vector<256x256xbf16> to vector<256x256xf32>
    %c0_1 = arith.constant 0 : index
    %c0_2 = arith.constant 0 : index
    %2 = vector.load %arg1[%c0_1, %c0_2] : memref<256x128xf32, #tpu.memory_space<vmem>>, vector<256x128xf32>
    %cst = arith.constant dense<0.000000e+00> : vector<256x128xf32>
    %3 = tpu.matmul %1, %2, %cst {dimension_numbers = #tpu.dot_dimension_numbers<[1], [0], [0], [1], [0, 0, 1, 1], [], []>} : vector<256x256xf32>, vector<256x128xf32>, vector<256x128xf32> -> vector<256x128xf32>
    %cst_3 = arith.constant dense<0.000000e+00> : vector<256x128xf32>
    %4 = tpu.matmul %1, %3, %cst_3 {dimension_numbers = #tpu.dot_dimension_numbers<[1], [0], [0], [1], [0, 0, 1, 1], [], []>} : vector<256x256xf32>, vector<256x128xf32>, vector<256x128xf32> -> vector<256x128xf32>
    %cst_4 = arith.constant dense<0.000000e+00> : vector<256x128xf32>
    %5 = tpu.matmul %1, %4, %cst_4 {dimension_numbers = #tpu.dot_dimension_numbers<[1], [0], [0], [1], [0, 0, 1, 1], [], []>} : vector<256x256xf32>, vector<256x128xf32>, vector<256x128xf32> -> vector<256x128xf32>
    %c0_5 = arith.constant 0 : index
    %c0_6 = arith.constant 0 : index
    %6 = vector.load %arg2[%c0_5, %c0_6] : memref<128x128xf32, #tpu.memory_space<vmem>>, vector<128x128xf32>
    %cst_7 = arith.constant dense<0.000000e+00> : vector<256x128xf32>
    %7 = tpu.matmul %5, %6, %cst_7 {dimension_numbers = #tpu.dot_dimension_numbers<[1], [0], [0], [1], [0, 0, 1, 1], [], []>} : vector<256x128xf32>, vector<128x128xf32>, vector<256x128xf32> -> vector<256x128xf32>
    %c0_8 = arith.constant 0 : index
    %c0_9 = arith.constant 0 : index
    %8 = vector.load %arg3[%c0_8, %c0_9] : memref<1x128xf32, #tpu.memory_space<vmem>>, vector<1x128xf32>
    %9 = vector.broadcast %8 : vector<1x128xf32> to vector<256x128xf32>
    %10 = arith.addf %7, %9 : vector<256x128xf32>
    %cst_10 = arith.constant 0.000000e+00 : f32
    %11 = vector.broadcast %cst_10 : f32 to vector<256x128xf32>
    %12 = arith.maximumf %10, %11 : vector<256x128xf32>
    %13 = tpu.iota {dimensions = array<i32: 0>} : vector<256x128xi32>
    %c256_i32 = arith.constant 256 : i32
    %14 = vector.broadcast %c256_i32 : i32 to vector<256x128xi32>
    %15 = arith.cmpi slt, %13, %14 : vector<256x128xi32>
    %cst_11 = arith.constant 0.000000e+00 : f32
    %16 = vector.broadcast %cst_11 : f32 to vector<256x128xf32>
    %17 = arith.select %15, %12, %16 : vector<256x128xi1>, vector<256x128xf32>
    %c0_12 = arith.constant 0 : index
    %c0_13 = arith.constant 0 : index
    %18 = vector.load %arg4[%c0_12, %c0_13] : memref<8x256xf32, #tpu.memory_space<vmem>>, vector<8x256xf32>
    %cst_14 = arith.constant dense<0.000000e+00> : vector<8x128xf32>
    %19 = tpu.matmul %18, %17, %cst_14 {dimension_numbers = #tpu.dot_dimension_numbers<[1], [0], [0], [1], [0, 0, 1, 1], [], []>} : vector<8x256xf32>, vector<256x128xf32>, vector<8x128xf32> -> vector<8x128xf32>
    %c0_15 = arith.constant 0 : index
    %c0_16 = arith.constant 0 : index
    %20 = vector.load %arg5[%c0_15, %c0_16] : memref<8x128xf32, #tpu.memory_space<vmem>>, vector<8x128xf32>
    tpu.vector_store %arg5[%c0_15, %c0_16], %19 {strides = array<i32>} : memref<8x128xf32, #tpu.memory_space<vmem>>, vector<8x128xf32>,
    return
  }
}

</mosaic_0001>

<llo_original>
// kernel: subgcn_feature.1
$region0: #{subgcn_feature.1}
  #allocation0 [shape = 'u32[]', space=smem, size = 0x4, offset = 0x4, fixed_abs, tag = 'smem constant byte address 0x4 - core index']
  #allocation1 [shape = 'u32[144,128]{1,0:T(1,128)}', space=vmem, size = 0x12000, scoped, tag = 'internal scratch']
  %s0 = inlined_call_operand.vmem [shape: bf16[256,256], index: 0, kind: input, shape index: {}]
  %s1 = inlined_call_operand.vmem [shape: f32[256,128], index: 1, kind: input, shape index: {}]
  %s2 = inlined_call_operand.vmem [shape: f32[128,128], index: 2, kind: input, shape index: {}]
  %s3 = inlined_call_operand.vmem [shape: f32[1,128], index: 3, kind: input, shape index: {}]
  %s4 = inlined_call_operand.vmem [shape: f32[8,256], index: 4, kind: input, shape index: {}]
  %s5 = inlined_call_operand.vmem [shape: f32[8,128], index: 5, kind: output, shape index: {}]
  %s6 = sld [smem:[#allocation0]]
  $region30: #{subgcn_feature.1} parent=0
    _
  %s8 = ssub.s32 1, %s6
  %s9 = scalar_select 0, %s8, %s6
  // Predicated region
  $region2: #{subgcn_feature.1} parent=0 // pred_check
    _
  $region3: #{subgcn_feature.1} parent=0 // pred_check_branch
    %11 = sbr.rel (0) target = $region5
  $region4: #{subgcn_feature.1} parent=0 // pred_region
    _
  $region5: #{subgcn_feature.1} parent=0 // pred_fallthru
    _
  // Predicated region
  $region6: #{subgcn_feature.1} parent=0 // pred_check
    _
  $region7: #{subgcn_feature.1} parent=0 // pred_check_branch
    %13 = sbr.rel (0) target = $region9
  $region8: #{subgcn_feature.1} parent=0 // pred_region
    _
  $region9: #{subgcn_feature.1} parent=0 // pred_fallthru
    _
  // Predicated region
  $region10: #{subgcn_feature.1} parent=0 // pred_check
    _
  $region11: #{subgcn_feature.1} parent=0 // pred_check_branch
    %15 = sbr.rel (0) target = $region13
  $region12: #{subgcn_feature.1} parent=0 // pred_region
    _
  $region13: #{subgcn_feature.1} parent=0 // pred_fallthru
    _
  // Predicated region
  $region14: #{subgcn_feature.1} parent=0 // pred_check
    _
  $region15: #{subgcn_feature.1} parent=0 // pred_check_branch
    %17 = sbr.rel (0) target = $region17
  $region16: #{subgcn_feature.1} parent=0 // pred_region
    _
  $region17: #{subgcn_feature.1} parent=0 // pred_fallthru
    _
  // Predicated region
  $region18: #{subgcn_feature.1} parent=0 // pred_check
    _
  $region19: #{subgcn_feature.1} parent=0 // pred_check_branch
    %19 = sbr.rel (0) target = $region21
  $region20: #{subgcn_feature.1} parent=0 // pred_region
    _
  $region21: #{subgcn_feature.1} parent=0 // pred_fallthru
    _
  %v20 = vld [vmem:[%s0] sm:$0xff]
  %v21 = vld [vmem:[%s0 + $0x8] sm:$0xff]
  %v22 = vld [vmem:[%s0 + $0x10] sm:$0xff]
  %v23 = vld [vmem:[%s0 + $0x18] sm:$0xff]
  %v24 = vld [vmem:[%s0 + $0x20] sm:$0xff]
  %v25 = vld [vmem:[%s0 + $0x28] sm:$0xff]
  %v26 = vld [vmem:[%s0 + $0x30] sm:$0xff]
  %v27 = vld [vmem:[%s0 + $0x38] sm:$0xff]
  %v28 = vld [vmem:[%s0 + $0x40] sm:$0xff]
  %v29 = vld [vmem:[%s0 + $0x48] sm:$0xff]
  %v30 = vld [vmem:[%s0 + $0x50] sm:$0xff]
  %v31 = vld [vmem:[%s0 + $0x58] sm:$0xff]
  %v32 = vld [vmem:[%s0 + $0x60] sm:$0xff]
  %v33 = vld [vmem:[%s0 + $0x68] sm:$0xff]
  %v34 = vld [vmem:[%s0 + $0x70] sm:$0xff]
  %v35 = vld [vmem:[%s0 + $0x78] sm:$0xff]
  %v36 = vld [vmem:[%s0 + $0x80] sm:$0xff]
  %v37 = vld [vmem:[%s0 + $0x88] sm:$0xff]
  %v38 = vld [vmem:[%s0 + $0x90] sm:$0xff]
  %v39 = vld [vmem:[%s0 + $0x98] sm:$0xff]
  %v40 = vld [vmem:[%s0 + $0xa0] sm:$0xff]
  %v41 = vld [vmem:[%s0 + $0xa8] sm:$0xff]
  %v42 = vld [vmem:[%s0 + $0xb0] sm:$0xff]
  %v43 = vld [vmem:[%s0 + $0xb8] sm:$0xff]
  %v44 = vld [vmem:[%s0 + $0xc0] sm:$0xff]
  %v45 = vld [vmem:[%s0 + $0xc8] sm:$0xff]
  %v46 = vld [vmem:[%s0 + $0xd0] sm:$0xff]
  %v47 = vld [vmem:[%s0 + $0xd8] sm:$0xff]
  %v48 = vld [vmem:[%s0 + $0xe0] sm:$0xff]
  %v49 = vld [vmem:[%s0 + $0xe8] sm:$0xff]
  %v50 = vld [vmem:[%s0 + $0xf0] sm:$0xff]
  %v51 = vld [vmem:[%s0 + $0xf8] sm:$0xff]
  %v52 = vunpack.c.l.bf16 %v20
  %v53 = vunpack.c.h.bf16 %v20
  %v54 = vunpack.c.l.bf16 %v21
  %v55 = vunpack.c.h.bf16 %v21
  %v56 = vunpack.c.l.bf16 %v22
  %v57 = vunpack.c.h.bf16 %v22
  %v58 = vunpack.c.l.bf16 %v23
  %v59 = vunpack.c.h.bf16 %v23
  %v60 = vunpack.c.l.bf16 %v24
  %v61 = vunpack.c.h.bf16 %v24
  %v62 = vunpack.c.l.bf16 %v25
  %v63 = vunpack.c.h.bf16 %v25
  %v64 = vunpack.c.l.bf16 %v26
  %v65 = vunpack.c.h.bf16 %v26
  %v66 = vunpack.c.l.bf16 %v27
  %v67 = vunpack.c.h.bf16 %v27
  %v68 = vunpack.c.l.bf16 %v28
  %v69 = vunpack.c.h.bf16 %v28
  %v70 = vunpack.c.l.bf16 %v29
  %v71 = vunpack.c.h.bf16 %v29
  %v72 = vunpack.c.l.bf16 %v30
  %v73 = vunpack.c.h.bf16 %v30
  %v74 = vunpack.c.l.bf16 %v31
  %v75 = vunpack.c.h.bf16 %v31
  %v76 = vunpack.c.l.bf16 %v32
  %v77 = vunpack.c.h.bf16 %v32
  %v78 = vunpack.c.l.bf16 %v33
  %v79 = vunpack.c.h.bf16 %v33
  %v80 = vunpack.c.l.bf16 %v34
  %v81 = vunpack.c.h.bf16 %v34
  %v82 = vunpack.c.l.bf16 %v35
  %v83 = vunpack.c.h.bf16 %v35
  %v84 = vunpack.c.l.bf16 %v36
  %v85 = vunpack.c.h.bf16 %v36
  %v86 = vunpack.c.l.bf16 %v37
  %v87 = vunpack.c.h.bf16 %v37
  %v88 = vunpack.c.l.bf16 %v38
  %v89 = vunpack.c.h.bf16 %v38
  %v90 = vunpack.c.l.bf16 %v39
  %v91 = vunpack.c.h.bf16 %v39
  %v92 = vunpack.c.l.bf16 %v40
  %v93 = vunpack.c.h.bf16 %v40
  %v94 = vunpack.c.l.bf16 %v41
  %v95 = vunpack.c.h.bf16 %v41
  %v96 = vunpack.c.l.bf16 %v42
  %v97 = vunpack.c.h.bf16 %v42
  %v98 = vunpack.c.l.bf16 %v43
  %v99 = vunpack.c.h.bf16 %v43
  %v100 = vunpack.c.l.bf16 %v44
  %v101 = vunpack.c.h.bf16 %v44
  %v102 = vunpack.c.l.bf16 %v45
  %v103 = vunpack.c.h.bf16 %v45
  %v104 = vunpack.c.l.bf16 %v46
  %v105 = vunpack.c.h.bf16 %v46
  %v106 = vunpack.c.l.bf16 %v47
  %v107 = vunpack.c.h.bf16 %v47
  %v108 = vunpack.c.l.bf16 %v48
  %v109 = vunpack.c.h.bf16 %v48
  %v110 = vunpack.c.l.bf16 %v49
  %v111 = vunpack.c.h.bf16 %v49
  %v112 = vunpack.c.l.bf16 %v50
  %v113 = vunpack.c.h.bf16 %v50
  %v114 = vunpack.c.l.bf16 %v51
  %v115 = vunpack.c.h.bf16 %v51
  %v116 = vld [vmem:[%s1] sm:$0xff]
  %v117 = vld [vmem:[%s1 + $0x8] sm:$0xff]
  %v118 = vld [vmem:[%s1 + $0x10] sm:$0xff]
  %v119 = vld [vmem:[%s1 + $0x18] sm:$0xff]
  %v120 = vld [vmem:[%s1 + $0x20] sm:$0xff]
  %v121 = vld [vmem:[%s1 + $0x28] sm:$0xff]
  %v122 = vld [vmem:[%s1 + $0x30] sm:$0xff]
  %v123 = vld [vmem:[%s1 + $0x38] sm:$0xff]
  %v124 = vld [vmem:[%s1 + $0x40] sm:$0xff]
  %v125 = vld [vmem:[%s1 + $0x48] sm:$0xff]
  %v126 = vld [vmem:[%s1 + $0x50] sm:$0xff]
  %v127 = vld [vmem:[%s1 + $0x58] sm:$0xff]
  %v128 = vld [vmem:[%s1 + $0x60] sm:$0xff]
  %v129 = vld [vmem:[%s1 + $0x68] sm:$0xff]
  %v130 = vld [vmem:[%s1 + $0x70] sm:$0xff]
  %v131 = vld [vmem:[%s1 + $0x78] sm:$0xff]
  %v132 = vld [vmem:[%s1 + $0x80] sm:$0xff]
  %v133 = vld [vmem:[%s1 + $0x88] sm:$0xff]
  %v134 = vld [vmem:[%s1 + $0x90] sm:$0xff]
  %v135 = vld [vmem:[%s1 + $0x98] sm:$0xff]
  %v136 = vld [vmem:[%s1 + $0xa0] sm:$0xff]
  %v137 = vld [vmem:[%s1 + $0xa8] sm:$0xff]
  %v138 = vld [vmem:[%s1 + $0xb0] sm:$0xff]
  %v139 = vld [vmem:[%s1 + $0xb8] sm:$0xff]
  %v140 = vld [vmem:[%s1 + $0xc0] sm:$0xff]
  %v141 = vld [vmem:[%s1 + $0xc8] sm:$0xff]
  %v142 = vld [vmem:[%s1 + $0xd0] sm:$0xff]
  %v143 = vld [vmem:[%s1 + $0xd8] sm:$0xff]
  %v144 = vld [vmem:[%s1 + $0xe0] sm:$0xff]
  %v145 = vld [vmem:[%s1 + $0xe8] sm:$0xff]
  %v146 = vld [vmem:[%s1 + $0xf0] sm:$0xff]
  %v147 = vld [vmem:[%s1 + $0xf8] sm:$0xff]
  %148 = vmatprep.subr.mxu0 0.0
  %149 = vmatpush1.msra.mxu0 %v116
  %150 = vmatprep.subr.mxu0 0.0
  %151 = vmatpush1.msra.mxu0 %v117
  %152 = vmatprep.subr.mxu0 0.0
  %153 = vmatpush1.msra.mxu0 %v118
  %154 = vmatprep.subr.mxu0 0.0
  %155 = vmatpush1.msra.mxu0 %v119
  %156 = vmatprep.subr.mxu0 0.0
  %157 = vmatpush1.msra.mxu0 %v120
  %158 = vmatprep.subr.mxu0 0.0
  %159 = vmatpush1.msra.mxu0 %v121
  %160 = vmatprep.subr.mxu0 0.0
  %161 = vmatpush1.msra.mxu0 %v122
  %162 = vmatprep.subr.mxu0 0.0
  %163 = vmatpush1.msra.mxu0 %v123
  %164 = vmatprep.subr.mxu0 0.0
  %165 = vmatpush1.msra.mxu0 %v124
  %166 = vmatprep.subr.mxu0 0.0
  %167 = vmatpush1.msra.mxu0 %v125
  %168 = vmatprep.subr.mxu0 0.0
  %169 = vmatpush1.msra.mxu0 %v126
  %170 = vmatprep.subr.mxu0 0.0
  %171 = vmatpush1.msra.mxu0 %v127
  %172 = vmatprep.subr.mxu0 0.0
  %173 = vmatpush1.msra.mxu0 %v128
  %174 = vmatprep.subr.mxu0 0.0
  %175 = vmatpush1.msra.mxu0 %v129
  %176 = vmatprep.subr.mxu0 0.0
  %177 = vmatpush1.msra.mxu0 %v130
  %178 = vmatprep.subr.mxu0 0.0
  %179 = vmatpush1.msra.mxu0 %v131
  %180 = vmatprep.subr.mxu0 0.0
  %181 = vmatpush1.msra.mxu0 %v132
  %182 = vmatprep.subr.mxu0 0.0
  %183 = vmatpush1.msra.mxu0 %v133
  %184 = vmatprep.subr.mxu0 0.0
  %185 = vmatpush1.msra.mxu0 %v134
  %186 = vmatprep.subr.mxu0 0.0
  %187 = vmatpush1.msra.mxu0 %v135
  %188 = vmatprep.subr.mxu0 0.0
  %189 = vmatpush1.msra.mxu0 %v136
  %190 = vmatprep.subr.mxu0 0.0
  %191 = vmatpush1.msra.mxu0 %v137
  %192 = vmatprep.subr.mxu0 0.0
  %193 = vmatpush1.msra.mxu0 %v138
  %194 = vmatprep.subr.mxu0 0.0
  %195 = vmatpush1.msra.mxu0 %v139
  %196 = vmatprep.subr.mxu0 0.0
  %197 = vmatpush1.msra.mxu0 %v140
  %198 = vmatprep.subr.mxu0 0.0
  %199 = vmatpush1.msra.mxu0 %v141
  %200 = vmatprep.subr.mxu0 0.0
  %201 = vmatpush1.msra.mxu0 %v142
  %202 = vmatprep.subr.mxu0 0.0
  %203 = vmatpush1.msra.mxu0 %v143
  %204 = vmatprep.subr.mxu0 0.0
  %205 = vmatpush1.msra.mxu0 %v144
  %206 = vmatprep.subr.mxu0 0.0
  %207 = vmatpush1.msra.mxu0 %v145
  %208 = vmatprep.subr.mxu0 0.0
  %209 = vmatpush1.msra.mxu0 %v146
  %210 = vmatprep.subr.mxu0 0.0
  %211 = vmatpush1.msra.mxu0 %v147
  %212 = vmatprep.mubr.f32.mxu0 %v53
  %213 = vmatmul.mubr.f32.gmra.mrb[0].mxu0 %v52
  %v214 = vpop.f32.mrb[0].mxu0
  %v215 = vadd.f32 0.0, %v214
  %v216 = vpop.f32.mrb[0].mxu0
  %217 = vmatprep.mubr.f32.mxu0 %v55
  %218 = vmatmul.mubr.f32.gmra.mrb[0].mxu0 %v54
  %v219 = vpop.f32.mrb[0].mxu0
  %v220 = vadd.f32 0.0, %v219
  %v221 = vpop.f32.mrb[0].mxu0
  %222 = vmatprep.mubr.f32.mxu0 %v57
  %223 = vmatmul.mubr.f32.gmra.mrb[0].mxu0 %v56
  %v224 = vpop.f32.mrb[0].mxu0
  %v225 = vadd.f32 0.0, %v224
  %v226 = vpop.f32.mrb[0].mxu0
  %227 = vmatprep.mubr.f32.mxu0 %v59
  %228 = vmatmul.mubr.f32.gmra.mrb[0].mxu0 %v58
  %v229 = vpop.f32.mrb[0].mxu0
  %v230 = vadd.f32 0.0, %v229
  %v231 = vpop.f32.mrb[0].mxu0
  %232 = vmatprep.mubr.f32.mxu0 %v61
  %233 = vmatmul.mubr.f32.gmra.mrb[0].mxu0 %v60
  %v234 = vpop.f32.mrb[0].mxu0
  %v235 = vadd.f32 0.0, %v234
  %v236 = vpop.f32.mrb[0].mxu0
  %237 = vmatprep.mubr.f32.mxu0 %v63
  %238 = vmatmul.mubr.f32.gmra.mrb[0].mxu0 %v62
  %v239 = vpop.f32.mrb[0].mxu0
  %v240 = vadd.f32 0.0, %v239
  %v241 = vpop.f32.mrb[0].mxu0
  %242 = vmatprep.mubr.f32.mxu0 %v65
  %243 = vmatmul.mubr.f32.gmra.mrb[0].mxu0 %v64
  %v244 = vpop.f32.mrb[0].mxu0
  %v245 = vadd.f32 0.0, %v244
  %v246 = vpop.f32.mrb[0].mxu0
  %247 = vmatprep.mubr.f32.mxu0 %v67
  %248 = vmatmul.mubr.f32.gmra.mrb[0].mxu0 %v66
  %v249 = vpop.f32.mrb[0].mxu0
  %v250 = vadd.f32 0.0, %v249
  %v251 = vpop.f32.mrb[0].mxu0
  %252 = vmatprep.mubr.f32.mxu0 %v69
  %253 = vmatmul.mubr.f32.gmra.mrb[0].mxu0 %v68
  %v254 = vpop.f32.mrb[0].mxu0
  %v255 = vadd.f32 0.0, %v254
  %v256 = vpop.f32.mrb[0].mxu0
  %257 = vmatprep.mubr.f32.mxu0 %v71
  %258 = vmatmul.mubr.f32.gmra.mrb[0].mxu0 %v70
  %v259 = vpop.f32.mrb[0].mxu0
  %v260 = vadd.f32 0.0, %v259
  %v261 = vpop.f32.mrb[0].mxu0
  %262 = vmatprep.mubr.f32.mxu0 %v73
  %263 = vmatmul.mubr.f32.gmra.mrb[0].mxu0 %v72
  %v264 = vpop.f32.mrb[0].mxu0
  %v265 = vadd.f32 0.0, %v264
  %v266 = vpop.f32.mrb[0].mxu0
  %267 = vmatprep.mubr.f32.mxu0 %v75
  %268 = vmatmul.mubr.f32.gmra.mrb[0].mxu0 %v74
  %v269 = vpop.f32.mrb[0].mxu0
  %v270 = vadd.f32 0.0, %v269
  %v271 = vpop.f32.mrb[0].mxu0
  %272 = vmatprep.mubr.f32.mxu0 %v77
  %273 = vmatmul.mubr.f32.gmra.mrb[0].mxu0 %v76
  %v274 = vpop.f32.mrb[0].mxu0
  %v275 = vadd.f32 0.0, %v274
  %v276 = vpop.f32.mrb[0].mxu0
  %277 = vmatprep.mubr.f32.mxu0 %v79
  %278 = vmatmul.mubr.f32.gmra.mrb[0].mxu0 %v78
  %v279 = vpop.f32.mrb[0].mxu0
  %v280 = vadd.f32 0.0, %v279
  %v281 = vpop.f32.mrb[0].mxu0
  %282 = vmatprep.mubr.f32.mxu0 %v81
  %283 = vmatmul.mubr.f32.gmra.mrb[0].mxu0 %v80
  %v284 = vpop.f32.mrb[0].mxu0
  %v285 = vadd.f32 0.0, %v284
  %v286 = vpop.f32.mrb[0].mxu0
  %287 = vmatprep.mubr.f32.mxu0 %v83
  %288 = vmatmul.mubr.f32.gmra.mrb[0].mxu0 %v82
  %v289 = vpop.f32.mrb[0].mxu0
  %v290 = vadd.f32 0.0, %v289
  %v291 = vpop.f32.mrb[0].mxu0
  %292 = vmatprep.mubr.f32.mxu0 %v85
  %293 = vmatmul.mubr.f32.gmra.mrb[0].mxu0 %v84
  %v294 = vpop.f32.mrb[0].mxu0
  %v295 = vadd.f32 0.0, %v294
  %v296 = vpop.f32.mrb[0].mxu0
  %297 = vmatprep.mubr.f32.mxu0 %v87
  %298 = vmatmul.mubr.f32.gmra.mrb[0].mxu0 %v86
  %v299 = vpop.f32.mrb[0].mxu0
  %v300 = vadd.f32 0.0, %v299
  %v301 = vpop.f32.mrb[0].mxu0
  %302 = vmatprep.mubr.f32.mxu0 %v89
  %303 = vmatmul.mubr.f32.gmra.mrb[0].mxu0 %v88
  %v304 = vpop.f32.mrb[0].mxu0
  %v305 = vadd.f32 0.0, %v304
  %v306 = vpop.f32.mrb[0].mxu0
  %307 = vmatprep.mubr.f32.mxu0 %v91
  %308 = vmatmul.mubr.f32.gmra.mrb[0].mxu0 %v90
  %v309 = vpop.f32.mrb[0].mxu0
  %v310 = vadd.f32 0.0, %v309
  %v311 = vpop.f32.mrb[0].mxu0
  %312 = vmatprep.mubr.f32.mxu0 %v93
  %313 = vmatmul.mubr.f32.gmra.mrb[0].mxu0 %v92
  %v314 = vpop.f32.mrb[0].mxu0
  %v315 = vadd.f32 0.0, %v314
  %v316 = vpop.f32.mrb[0].mxu0
  %317 = vmatprep.mubr.f32.mxu0 %v95
  %318 = vmatmul.mubr.f32.gmra.mrb[0].mxu0 %v94
  %v319 = vpop.f32.mrb[0].mxu0
  %v320 = vadd.f32 0.0, %v319
  %v321 = vpop.f32.mrb[0].mxu0
  %322 = vmatprep.mubr.f32.mxu0 %v97
  %323 = vmatmul.mubr.f32.gmra.mrb[0].mxu0 %v96
  %v324 = vpop.f32.mrb[0].mxu0
  %v325 = vadd.f32 0.0, %v324
  %v326 = vpop.f32.mrb[0].mxu0
  %327 = vmatprep.mubr.f32.mxu0 %v99
  %328 = vmatmul.mubr.f32.gmra.mrb[0].mxu0 %v98
  %v329 = vpop.f32.mrb[0].mxu0
  %v330 = vadd.f32 0.0, %v329
  %v331 = vpop.f32.mrb[0].mxu0
  %332 = vmatprep.mubr.f32.mxu0 %v101
  %333 = vmatmul.mubr.f32.gmra.mrb[0].mxu0 %v100
  %v334 = vpop.f32.mrb[0].mxu0
  %v335 = vadd.f32 0.0, %v334
  %v336 = vpop.f32.mrb[0].mxu0
  %337 = vmatprep.mubr.f32.mxu0 %v103
  %338 = vmatmul.mubr.f32.gmra.mrb[0].mxu0 %v102
  %v339 = vpop.f32.mrb[0].mxu0
  %v340 = vadd.f32 0.0, %v339
  %v341 = vpop.f32.mrb[0].mxu0
  %342 = vmatprep.mubr.f32.mxu0 %v105
  %343 = vmatmul.mubr.f32.gmra.mrb[0].mxu0 %v104
  %v344 = vpop.f32.mrb[0].mxu0
  %v345 = vadd.f32 0.0, %v344
  %v346 = vpop.f32.mrb[0].mxu0
  %347 = vmatprep.mubr.f32.mxu0 %v107
  %348 = vmatmul.mubr.f32.gmra.mrb[0].mxu0 %v106
  %v349 = vpop.f32.mrb[0].mxu0
  %v350 = vadd.f32 0.0, %v349
  %v351 = vpop.f32.mrb[0].mxu0
  %352 = vmatprep.mubr.f32.mxu0 %v109
  %353 = vmatmul.mubr.f32.gmra.mrb[0].mxu0 %v108
  %v354 = vpop.f32.mrb[0].mxu0
  %v355 = vadd.f32 0.0, %v354
  %v356 = vpop.f32.mrb[0].mxu0
  %357 = vmatprep.mubr.f32.mxu0 %v111
  %358 = vmatmul.mubr.f32.gmra.mrb[0].mxu0 %v110
  %v359 = vpop.f32.mrb[0].mxu0
  %v360 = vadd.f32 0.0, %v359
  %v361 = vpop.f32.mrb[0].mxu0
  %362 = vmatprep.mubr.f32.mxu0 %v113
  %363 = vmatmul.mubr.f32.gmra.mrb[0].mxu0 %v112
  %v364 = vpop.f32.mrb[0].mxu0
  %v365 = vadd.f32 0.0, %v364
  %v366 = vpop.f32.mrb[0].mxu0
  %367 = vmatprep.mubr.f32.mxu0 %v115
  %368 = vmatmul.mubr.f32.gmra.mrb[0].mxu0 %v114
  %v369 = vpop.f32.mrb[0].mxu0
  %v370 = vadd.f32 0.0, %v369
  %v371 = vpop.f32.mrb[0].mxu0
  %372 = vdwg.mxu0
  %373 = vmatprep.subr.mxu0 0.0
  %374 = vmatpush1.msra.mxu0 %v215
  %375 = vmatprep.subr.mxu0 0.0
  %376 = vmatpush1.msra.mxu0 %v220
  %377 = vmatprep.subr.mxu0 0.0
  %378 = vmatpush1.msra.mxu0 %v225
  %379 = vmatprep.subr.mxu0 0.0
  %380 = vmatpush1.msra.mxu0 %v230
  %381 = vmatprep.subr.mxu0 0.0
  %382 = vmatpush1.msra.mxu0 %v235
  %383 = vmatprep.subr.mxu0 0.0
  %384 = vmatpush1.msra.mxu0 %v240
  %385 = vmatprep.subr.mxu0 0.0
  %386 = vmatpush1.msra.mxu0 %v245
  %387 = vmatprep.subr.mxu0 0.0
  %388 = vmatpush1.msra.mxu0 %v250
  %389 = vmatprep.subr.mxu0 0.0
  %390 = vmatpush1.msra.mxu0 %v255
  %391 = vmatprep.subr.mxu0 0.0
  %392 = vmatpush1.msra.mxu0 %v260
  %393 = vmatprep.subr.mxu0 0.0
  %394 = vmatpush1.msra.mxu0 %v265
  %395 = vmatprep.subr.mxu0 0.0
  %396 = vmatpush1.msra.mxu0 %v270
  %397 = vmatprep.subr.mxu0 0.0
  %398 = vmatpush1.msra.mxu0 %v275
  %399 = vmatprep.subr.mxu0 0.0
  %400 = vmatpush1.msra.mxu0 %v280
  %401 = vmatprep.subr.mxu0 0.0
  %402 = vmatpush1.msra.mxu0 %v285
  %403 = vmatprep.subr.mxu0 0.0
  %404 = vmatpush1.msra.mxu0 %v290
  %405 = vmatprep.subr.mxu0 0.0
  %406 = vmatpush1.msra.mxu0 %v295
  %407 = vmatprep.subr.mxu0 0.0
  %408 = vmatpush1.msra.mxu0 %v300
  %409 = vmatprep.subr.mxu0 0.0
  %410 = vmatpush1.msra.mxu0 %v305
  %411 = vmatprep.subr.mxu0 0.0
  %412 = vmatpush1.msra.mxu0 %v310
  %413 = vmatprep.subr.mxu0 0.0
  %414 = vmatpush1.msra.mxu0 %v315
  %415 = vmatprep.subr.mxu0 0.0
  %416 = vmatpush1.msra.mxu0 %v320
  %417 = vmatprep.subr.mxu0 0.0
  %418 = vmatpush1.msra.mxu0 %v325
  %419 = vmatprep.subr.mxu0 0.0
  %420 = vmatpush1.msra.mxu0 %v330
  %421 = vmatprep.subr.mxu0 0.0
  %422 = vmatpush1.msra.mxu0 %v335
  %423 = vmatprep.subr.mxu0 0.0
  %424 = vmatpush1.msra.mxu0 %v340
  %425 = vmatprep.subr.mxu0 0.0
  %426 = vmatpush1.msra.mxu0 %v345
  %427 = vmatprep.subr.mxu0 0.0
  %428 = vmatpush1.msra.mxu0 %v350
  %429 = vmatprep.subr.mxu0 0.0
  %430 = vmatpush1.msra.mxu0 %v355
  %431 = vmatprep.subr.mxu0 0.0
  %432 = vmatpush1.msra.mxu0 %v360
  %433 = vmatprep.subr.mxu0 0.0
  %434 = vmatpush1.msra.mxu0 %v365
  %435 = vmatprep.subr.mxu0 0.0
  %436 = vmatpush1.msra.mxu0 %v370
  %437 = vmatprep.mubr.f32.mxu0 %v53
  %438 = vmatmul.mubr.f32.gmra.mrb[0].mxu0 %v52
  %v439 = vpop.f32.mrb[0].mxu0
  %v440 = vadd.f32 0.0, %v439
  %v441 = vpop.f32.mrb[0].mxu0
  %442 = vmatprep.mubr.f32.mxu0 %v55
  %443 = vmatmul.mubr.f32.gmra.mrb[0].mxu0 %v54
  %v444 = vpop.f32.mrb[0].mxu0
  %v445 = vadd.f32 0.0, %v444
  %v446 = vpop.f32.mrb[0].mxu0
  %447 = vmatprep.mubr.f32.mxu0 %v57
  %448 = vmatmul.mubr.f32.gmra.mrb[0].mxu0 %v56
  %v449 = vpop.f32.mrb[0].mxu0
  %v450 = vadd.f32 0.0, %v449
  %v451 = vpop.f32.mrb[0].mxu0
  %452 = vmatprep.mubr.f32.mxu0 %v59
  %453 = vmatmul.mubr.f32.gmra.mrb[0].mxu0 %v58
  %v454 = vpop.f32.mrb[0].mxu0
  %v455 = vadd.f32 0.0, %v454
  %v456 = vpop.f32.mrb[0].mxu0
  %457 = vmatprep.mubr.f32.mxu0 %v61
  %458 = vmatmul.mubr.f32.gmra.mrb[0].mxu0 %v60
  %v459 = vpop.f32.mrb[0].mxu0
  %v460 = vadd.f32 0.0, %v459
  %v461 = vpop.f32.mrb[0].mxu0
  %462 = vmatprep.mubr.f32.mxu0 %v63
  %463 = vmatmul.mubr.f32.gmra.mrb[0].mxu0 %v62
  %v464 = vpop.f32.mrb[0].mxu0
  %v465 = vadd.f32 0.0, %v464
  %v466 = vpop.f32.mrb[0].mxu0
  %467 = vmatprep.mubr.f32.mxu0 %v65
  %468 = vmatmul.mubr.f32.gmra.mrb[0].mxu0 %v64
  %v469 = vpop.f32.mrb[0].mxu0
  %v470 = vadd.f32 0.0, %v469
  %v471 = vpop.f32.mrb[0].mxu0
  %472 = vmatprep.mubr.f32.mxu0 %v67
  %473 = vmatmul.mubr.f32.gmra.mrb[0].mxu0 %v66
  %v474 = vpop.f32.mrb[0].mxu0
  %v475 = vadd.f32 0.0, %v474
  %v476 = vpop.f32.mrb[0].mxu0
  %477 = vmatprep.mubr.f32.mxu0 %v69
  %478 = vmatmul.mubr.f32.gmra.mrb[0].mxu0 %v68
  %v479 = vpop.f32.mrb[0].mxu0
  %v480 = vadd.f32 0.0, %v479
  %v481 = vpop.f32.mrb[0].mxu0
  %482 = vmatprep.mubr.f32.mxu0 %v71
  %483 = vmatmul.mubr.f32.gmra.mrb[0].mxu0 %v70
  %v484 = vpop.f32.mrb[0].mxu0
  %v485 = vadd.f32 0.0, %v484
  %v486 = vpop.f32.mrb[0].mxu0
  %487 = vmatprep.mubr.f32.mxu0 %v73
  %488 = vmatmul.mubr.f32.gmra.mrb[0].mxu0 %v72
  %v489 = vpop.f32.mrb[0].mxu0
  %v490 = vadd.f32 0.0, %v489
  %v491 = vpop.f32.mrb[0].mxu0
  %492 = vmatprep.mubr.f32.mxu0 %v75
  %493 = vmatmul.mubr.f32.gmra.mrb[0].mxu0 %v74
  %v494 = vpop.f32.mrb[0].mxu0
  %v495 = vadd.f32 0.0, %v494
  %v496 = vpop.f32.mrb[0].mxu0
  %497 = vmatprep.mubr.f32.mxu0 %v77
  %498 = vmatmul.mubr.f32.gmra.mrb[0].mxu0 %v76
  %v499 = vpop.f32.mrb[0].mxu0
  %v500 = vadd.f32 0.0, %v499
  %v501 = vpop.f32.mrb[0].mxu0
  %502 = vmatprep.mubr.f32.mxu0 %v79
  %503 = vmatmul.mubr.f32.gmra.mrb[0].mxu0 %v78
  %v504 = vpop.f32.mrb[0].mxu0
  %v505 = vadd.f32 0.0, %v504
  %v506 = vpop.f32.mrb[0].mxu0
  %507 = vmatprep.mubr.f32.mxu0 %v81
  %508 = vmatmul.mubr.f32.gmra.mrb[0].mxu0 %v80
  %v509 = vpop.f32.mrb[0].mxu0
  %v510 = vadd.f32 0.0, %v509
  %v511 = vpop.f32.mrb[0].mxu0
  %512 = vmatprep.mubr.f32.mxu0 %v83
  %513 = vmatmul.mubr.f32.gmra.mrb[0].mxu0 %v82
  %v514 = vpop.f32.mrb[0].mxu0
  %v515 = vadd.f32 0.0, %v514
  %v516 = vpop.f32.mrb[0].mxu0
  %517 = vmatprep.mubr.f32.mxu0 %v85
  %518 = vmatmul.mubr.f32.gmra.mrb[0].mxu0 %v84
  %v519 = vpop.f32.mrb[0].mxu0
  %v520 = vadd.f32 0.0, %v519
  %v521 = vpop.f32.mrb[0].mxu0
  %522 = vmatprep.mubr.f32.mxu0 %v87
  %523 = vmatmul.mubr.f32.gmra.mrb[0].mxu0 %v86
  %v524 = vpop.f32.mrb[0].mxu0
  %v525 = vadd.f32 0.0, %v524
  %v526 = vpop.f32.mrb[0].mxu0
  %527 = vmatprep.mubr.f32.mxu0 %v89
  %528 = vmatmul.mubr.f32.gmra.mrb[0].mxu0 %v88
  %v529 = vpop.f32.mrb[0].mxu0
  %v530 = vadd.f32 0.0, %v529
  %v531 = vpop.f32.mrb[0].mxu0
  %532 = vmatprep.mubr.f32.mxu0 %v91
  %533 = vmatmul.mubr.f32.gmra.mrb[0].mxu0 %v90
  %v534 = vpop.f32.mrb[0].mxu0
  %v535 = vadd.f32 0.0, %v534
  %v536 = vpop.f32.mrb[0].mxu0
  %537 = vmatprep.mubr.f32.mxu0 %v93
  %538 = vmatmul.mubr.f32.gmra.mrb[0].mxu0 %v92
  %v539 = vpop.f32.mrb[0].mxu0
  %v540 = vadd.f32 0.0, %v539
  %v541 = vpop.f32.mrb[0].mxu0
  %542 = vmatprep.mubr.f32.mxu0 %v95
  %543 = vmatmul.mubr.f32.gmra.mrb[0].mxu0 %v94
  %v544 = vpop.f32.mrb[0].mxu0
  %v545 = vadd.f32 0.0, %v544
  %v546 = vpop.f32.mrb[0].mxu0
  %547 = vmatprep.mubr.f32.mxu0 %v97
  %548 = vmatmul.mubr.f32.gmra.mrb[0].mxu0 %v96
  %v549 = vpop.f32.mrb[0].mxu0
  %v550 = vadd.f32 0.0, %v549
  %v551 = vpop.f32.mrb[0].mxu0
  %552 = vmatprep.mubr.f32.mxu0 %v99
  %553 = vmatmul.mubr.f32.gmra.mrb[0].mxu0 %v98
  %v554 = vpop.f32.mrb[0].mxu0
  %v555 = vadd.f32 0.0, %v554
  %v556 = vpop.f32.mrb[0].mxu0
  %557 = vmatprep.mubr.f32.mxu0 %v101
  %558 = vmatmul.mubr.f32.gmra.mrb[0].mxu0 %v100
  %v559 = vpop.f32.mrb[0].mxu0
  %v560 = vadd.f32 0.0, %v559
  %v561 = vpop.f32.mrb[0].mxu0
  %562 = vmatprep.mubr.f32.mxu0 %v103
  %563 = vmatmul.mubr.f32.gmra.mrb[0].mxu0 %v102
  %v564 = vpop.f32.mrb[0].mxu0
  %v565 = vadd.f32 0.0, %v564
  %v566 = vpop.f32.mrb[0].mxu0
  %567 = vmatprep.mubr.f32.mxu0 %v105
  %568 = vmatmul.mubr.f32.gmra.mrb[0].mxu0 %v104
  %v569 = vpop.f32.mrb[0].mxu0
  %v570 = vadd.f32 0.0, %v569
  %v571 = vpop.f32.mrb[0].mxu0
  %572 = vmatprep.mubr.f32.mxu0 %v107
  %573 = vmatmul.mubr.f32.gmra.mrb[0].mxu0 %v106
  %v574 = vpop.f32.mrb[0].mxu0
  %v575 = vadd.f32 0.0, %v574
  %v576 = vpop.f32.mrb[0].mxu0
  %577 = vmatprep.mubr.f32.mxu0 %v109
  %578 = vmatmul.mubr.f32.gmra.mrb[0].mxu0 %v108
  %v579 = vpop.f32.mrb[0].mxu0
  %v580 = vadd.f32 0.0, %v579
  %v581 = vpop.f32.mrb[0].mxu0
  %582 = vmatprep.mubr.f32.mxu0 %v111
  %583 = vmatmul.mubr.f32.gmra.mrb[0].mxu0 %v110
  %v584 = vpop.f32.mrb[0].mxu0
  %v585 = vadd.f32 0.0, %v584
  %v586 = vpop.f32.mrb[0].mxu0
  %587 = vmatprep.mubr.f32.mxu0 %v113
  %588 = vmatmul.mubr.f32.gmra.mrb[0].mxu0 %v112
  %v589 = vpop.f32.mrb[0].mxu0
  %v590 = vadd.f32 0.0, %v589
  %v591 = vpop.f32.mrb[0].mxu0
  %592 = vmatprep.mubr.f32.mxu0 %v115
  %593 = vmatmul.mubr.f32.gmra.mrb[0].mxu0 %v114
  %v594 = vpop.f32.mrb[0].mxu0
  %v595 = vadd.f32 0.0, %v594
  %v596 = vpop.f32.mrb[0].mxu0
  %597 = vdwg.mxu0
  %598 = vmatprep.subr.mxu0 0.0
  %599 = vmatpush1.msra.mxu0 %v440
  %600 = vmatprep.subr.mxu0 0.0
  %601 = vmatpush1.msra.mxu0 %v445
  %602 = vmatprep.subr.mxu0 0.0
  %603 = vmatpush1.msra.mxu0 %v450
  %604 = vmatprep.subr.mxu0 0.0
  %605 = vmatpush1.msra.mxu0 %v455
  %606 = vmatprep.subr.mxu0 0.0
  %607 = vmatpush1.msra.mxu0 %v460
  %608 = vmatprep.subr.mxu0 0.0
  %609 = vmatpush1.msra.mxu0 %v465
  %610 = vmatprep.subr.mxu0 0.0
  %611 = vmatpush1.msra.mxu0 %v470
  %612 = vmatprep.subr.mxu0 0.0
  %613 = vmatpush1.msra.mxu0 %v475
  %614 = vmatprep.subr.mxu0 0.0
  %615 = vmatpush1.msra.mxu0 %v480
  %616 = vmatprep.subr.mxu0 0.0
  %617 = vmatpush1.msra.mxu0 %v485
  %618 = vmatprep.subr.mxu0 0.0
  %619 = vmatpush1.msra.mxu0 %v490
  %620 = vmatprep.subr.mxu0 0.0
  %621 = vmatpush1.msra.mxu0 %v495
  %622 = vmatprep.subr.mxu0 0.0
  %623 = vmatpush1.msra.mxu0 %v500
  %624 = vmatprep.subr.mxu0 0.0
  %625 = vmatpush1.msra.mxu0 %v505
  %626 = vmatprep.subr.mxu0 0.0
  %627 = vmatpush1.msra.mxu0 %v510
  %628 = vmatprep.subr.mxu0 0.0
  %629 = vmatpush1.msra.mxu0 %v515
  %630 = vmatprep.subr.mxu0 0.0
  %631 = vmatpush1.msra.mxu0 %v520
  %632 = vmatprep.subr.mxu0 0.0
  %633 = vmatpush1.msra.mxu0 %v525
  %634 = vmatprep.subr.mxu0 0.0
  %635 = vmatpush1.msra.mxu0 %v530
  %636 = vmatprep.subr.mxu0 0.0
  %637 = vmatpush1.msra.mxu0 %v535
  %638 = vmatprep.subr.mxu0 0.0
  %639 = vmatpush1.msra.mxu0 %v540
  %640 = vmatprep.subr.mxu0 0.0
  %641 = vmatpush1.msra.mxu0 %v545
  %642 = vmatprep.subr.mxu0 0.0
  %643 = vmatpush1.msra.mxu0 %v550
  %644 = vmatprep.subr.mxu0 0.0
  %645 = vmatpush1.msra.mxu0 %v555
  %646 = vmatprep.subr.mxu0 0.0
  %647 = vmatpush1.msra.mxu0 %v560
  %648 = vmatprep.subr.mxu0 0.0
  %649 = vmatpush1.msra.mxu0 %v565
  %650 = vmatprep.subr.mxu0 0.0
  %651 = vmatpush1.msra.mxu0 %v570
  %652 = vmatprep.subr.mxu0 0.0
  %653 = vmatpush1.msra.mxu0 %v575
  %654 = vmatprep.subr.mxu0 0.0
  %655 = vmatpush1.msra.mxu0 %v580
  %656 = vmatprep.subr.mxu0 0.0
  %657 = vmatpush1.msra.mxu0 %v585
  %658 = vmatprep.subr.mxu0 0.0
  %659 = vmatpush1.msra.mxu0 %v590
  %660 = vmatprep.subr.mxu0 0.0
  %661 = vmatpush1.msra.mxu0 %v595
  %662 = vmatprep.mubr.f32.mxu0 %v53
  %663 = vmatmul.mubr.f32.gmra.mrb[0].mxu0 %v52
  %v664 = vpop.f32.mrb[0].mxu0
  %v665 = vadd.f32 0.0, %v664
  %v666 = vpop.f32.mrb[0].mxu0
  %667 = vmatprep.mubr.f32.mxu0 %v55
  %668 = vmatmul.mubr.f32.gmra.mrb[0].mxu0 %v54
  %v669 = vpop.f32.mrb[0].mxu0
  %v670 = vadd.f32 0.0, %v669
  %v671 = vpop.f32.mrb[0].mxu0
  %672 = vmatprep.mubr.f32.mxu0 %v57
  %673 = vmatmul.mubr.f32.gmra.mrb[0].mxu0 %v56
  %v674 = vpop.f32.mrb[0].mxu0
  %v675 = vadd.f32 0.0, %v674
  %v676 = vpop.f32.mrb[0].mxu0
  %677 = vmatprep.mubr.f32.mxu0 %v59
  %678 = vmatmul.mubr.f32.gmra.mrb[0].mxu0 %v58
  %v679 = vpop.f32.mrb[0].mxu0
  %v680 = vadd.f32 0.0, %v679
  %v681 = vpop.f32.mrb[0].mxu0
  %682 = vmatprep.mubr.f32.mxu0 %v61
  %683 = vmatmul.mubr.f32.gmra.mrb[0].mxu0 %v60
  %v684 = vpop.f32.mrb[0].mxu0
  %v685 = vadd.f32 0.0, %v684
  %v686 = vpop.f32.mrb[0].mxu0
  %687 = vmatprep.mubr.f32.mxu0 %v63
  %688 = vmatmul.mubr.f32.gmra.mrb[0].mxu0 %v62
  %v689 = vpop.f32.mrb[0].mxu0
  %v690 = vadd.f32 0.0, %v689
  %v691 = vpop.f32.mrb[0].mxu0
  %692 = vmatprep.mubr.f32.mxu0 %v65
  %693 = vmatmul.mubr.f32.gmra.mrb[0].mxu0 %v64
  %v694 = vpop.f32.mrb[0].mxu0
  %v695 = vadd.f32 0.0, %v694
  %v696 = vpop.f32.mrb[0].mxu0
  %697 = vmatprep.mubr.f32.mxu0 %v67
  %698 = vmatmul.mubr.f32.gmra.mrb[0].mxu0 %v66
  %v699 = vpop.f32.mrb[0].mxu0
  %v700 = vadd.f32 0.0, %v699
  %v701 = vpop.f32.mrb[0].mxu0
  %702 = vmatprep.mubr.f32.mxu0 %v69
  %703 = vmatmul.mubr.f32.gmra.mrb[0].mxu0 %v68
  %v704 = vpop.f32.mrb[0].mxu0
  %v705 = vadd.f32 0.0, %v704
  %v706 = vpop.f32.mrb[0].mxu0
  %707 = vmatprep.mubr.f32.mxu0 %v71
  %708 = vmatmul.mubr.f32.gmra.mrb[0].mxu0 %v70
  %v709 = vpop.f32.mrb[0].mxu0
  %v710 = vadd.f32 0.0, %v709
  %v711 = vpop.f32.mrb[0].mxu0
  %712 = vmatprep.mubr.f32.mxu0 %v73
  %713 = vmatmul.mubr.f32.gmra.mrb[0].mxu0 %v72
  %v714 = vpop.f32.mrb[0].mxu0
  %v715 = vadd.f32 0.0, %v714
  %v716 = vpop.f32.mrb[0].mxu0
  %717 = vmatprep.mubr.f32.mxu0 %v75
  %718 = vmatmul.mubr.f32.gmra.mrb[0].mxu0 %v74
  %v719 = vpop.f32.mrb[0].mxu0
  %v720 = vadd.f32 0.0, %v719
  %v721 = vpop.f32.mrb[0].mxu0
  %722 = vmatprep.mubr.f32.mxu0 %v77
  %723 = vmatmul.mubr.f32.gmra.mrb[0].mxu0 %v76
  %v724 = vpop.f32.mrb[0].mxu0
  %v725 = vadd.f32 0.0, %v724
  %v726 = vpop.f32.mrb[0].mxu0
  %727 = vmatprep.mubr.f32.mxu0 %v79
  %728 = vmatmul.mubr.f32.gmra.mrb[0].mxu0 %v78
  %v729 = vpop.f32.mrb[0].mxu0
  %v730 = vadd.f32 0.0, %v729
  %v731 = vpop.f32.mrb[0].mxu0
  %732 = vmatprep.mubr.f32.mxu0 %v81
  %733 = vmatmul.mubr.f32.gmra.mrb[0].mxu0 %v80
  %v734 = vpop.f32.mrb[0].mxu0
  %v735 = vadd.f32 0.0, %v734
  %v736 = vpop.f32.mrb[0].mxu0
  %737 = vmatprep.mubr.f32.mxu0 %v83
  %738 = vmatmul.mubr.f32.gmra.mrb[0].mxu0 %v82
  %v739 = vpop.f32.mrb[0].mxu0
  %v740 = vadd.f32 0.0, %v739
  %v741 = vpop.f32.mrb[0].mxu0
  %742 = vmatprep.mubr.f32.mxu0 %v85
  %743 = vmatmul.mubr.f32.gmra.mrb[0].mxu0 %v84
  %v744 = vpop.f32.mrb[0].mxu0
  %v745 = vadd.f32 0.0, %v744
  %v746 = vpop.f32.mrb[0].mxu0
  %747 = vmatprep.mubr.f32.mxu0 %v87
  %748 = vmatmul.mubr.f32.gmra.mrb[0].mxu0 %v86
  %v749 = vpop.f32.mrb[0].mxu0
  %v750 = vadd.f32 0.0, %v749
  %v751 = vpop.f32.mrb[0].mxu0
  %752 = vmatprep.mubr.f32.mxu0 %v89
  %753 = vmatmul.mubr.f32.gmra.mrb[0].mxu0 %v88
  %v754 = vpop.f32.mrb[0].mxu0
  %v755 = vadd.f32 0.0, %v754
  %v756 = vpop.f32.mrb[0].mxu0
  %757 = vmatprep.mubr.f32.mxu0 %v91
  %758 = vmatmul.mubr.f32.gmra.mrb[0].mxu0 %v90
  %v759 = vpop.f32.mrb[0].mxu0
  %v760 = vadd.f32 0.0, %v759
  %v761 = vpop.f32.mrb[0].mxu0
  %762 = vmatprep.mubr.f32.mxu0 %v93
  %763 = vmatmul.mubr.f32.gmra.mrb[0].mxu0 %v92
  %v764 = vpop.f32.mrb[0].mxu0
  %v765 = vadd.f32 0.0, %v764
  %v766 = vpop.f32.mrb[0].mxu0
  %767 = vmatprep.mubr.f32.mxu0 %v95
  %768 = vmatmul.mubr.f32.gmra.mrb[0].mxu0 %v94
  %v769 = vpop.f32.mrb[0].mxu0
  %v770 = vadd.f32 0.0, %v769
  %v771 = vpop.f32.mrb[0].mxu0
  %772 = vmatprep.mubr.f32.mxu0 %v97
  %773 = vmatmul.mubr.f32.gmra.mrb[0].mxu0 %v96
  %v774 = vpop.f32.mrb[0].mxu0
  %v775 = vadd.f32 0.0, %v774
  %v776 = vpop.f32.mrb[0].mxu0
  %777 = vmatprep.mubr.f32.mxu0 %v99
  %778 = vmatmul.mubr.f32.gmra.mrb[0].mxu0 %v98
  %v779 = vpop.f32.mrb[0].mxu0
  %v780 = vadd.f32 0.0, %v779
  %v781 = vpop.f32.mrb[0].mxu0
  %782 = vmatprep.mubr.f32.mxu0 %v101
  %783 = vmatmul.mubr.f32.gmra.mrb[0].mxu0 %v100
  %v784 = vpop.f32.mrb[0].mxu0
  %v785 = vadd.f32 0.0, %v784
  %v786 = vpop.f32.mrb[0].mxu0
  %787 = vmatprep.mubr.f32.mxu0 %v103
  %788 = vmatmul.mubr.f32.gmra.mrb[0].mxu0 %v102
  %v789 = vpop.f32.mrb[0].mxu0
  %v790 = vadd.f32 0.0, %v789
  %v791 = vpop.f32.mrb[0].mxu0
  %792 = vmatprep.mubr.f32.mxu0 %v105
  %793 = vmatmul.mubr.f32.gmra.mrb[0].mxu0 %v104
  %v794 = vpop.f32.mrb[0].mxu0
  %v795 = vadd.f32 0.0, %v794
  %v796 = vpop.f32.mrb[0].mxu0
  %797 = vmatprep.mubr.f32.mxu0 %v107
  %798 = vmatmul.mubr.f32.gmra.mrb[0].mxu0 %v106
  %v799 = vpop.f32.mrb[0].mxu0
  %v800 = vadd.f32 0.0, %v799
  %v801 = vpop.f32.mrb[0].mxu0
  %802 = vmatprep.mubr.f32.mxu0 %v109
  %803 = vmatmul.mubr.f32.gmra.mrb[0].mxu0 %v108
  %v804 = vpop.f32.mrb[0].mxu0
  %v805 = vadd.f32 0.0, %v804
  %v806 = vpop.f32.mrb[0].mxu0
  %807 = vmatprep.mubr.f32.mxu0 %v111
  %808 = vmatmul.mubr.f32.gmra.mrb[0].mxu0 %v110
  %v809 = vpop.f32.mrb[0].mxu0
  %v810 = vadd.f32 0.0, %v809
  %v811 = vpop.f32.mrb[0].mxu0
  %812 = vmatprep.mubr.f32.mxu0 %v113
  %813 = vmatmul.mubr.f32.gmra.mrb[0].mxu0 %v112
  %v814 = vpop.f32.mrb[0].mxu0
  %v815 = vadd.f32 0.0, %v814
  %v816 = vpop.f32.mrb[0].mxu0
  %817 = vmatprep.mubr.f32.mxu0 %v115
  %818 = vmatmul.mubr.f32.gmra.mrb[0].mxu0 %v114
  %v819 = vpop.f32.mrb[0].mxu0
  %v820 = vadd.f32 0.0, %v819
  %v821 = vpop.f32.mrb[0].mxu0
  %822 = vdwg.mxu0
  %v823 = vld [vmem:[%s2] sm:$0xff]
  %v824 = vld [vmem:[%s2 + $0x8] sm:$0xff]
  %v825 = vld [vmem:[%s2 + $0x10] sm:$0xff]
  %v826 = vld [vmem:[%s2 + $0x18] sm:$0xff]
  %v827 = vld [vmem:[%s2 + $0x20] sm:$0xff]
  %v828 = vld [vmem:[%s2 + $0x28] sm:$0xff]
  %v829 = vld [vmem:[%s2 + $0x30] sm:$0xff]
  %v830 = vld [vmem:[%s2 + $0x38] sm:$0xff]
  %v831 = vld [vmem:[%s2 + $0x40] sm:$0xff]
  %v832 = vld [vmem:[%s2 + $0x48] sm:$0xff]
  %v833 = vld [vmem:[%s2 + $0x50] sm:$0xff]
  %v834 = vld [vmem:[%s2 + $0x58] sm:$0xff]
  %v835 = vld [vmem:[%s2 + $0x60] sm:$0xff]
  %v836 = vld [vmem:[%s2 + $0x68] sm:$0xff]
  %v837 = vld [vmem:[%s2 + $0x70] sm:$0xff]
  %v838 = vld [vmem:[%s2 + $0x78] sm:$0xff]
  %v839 = vld [vmem:[%s3] sm:$0x1]
  %v841 = vlaneseq
  %v842 = vshrl.u32 %v841, 7
  %v843 = vsub.s32 0, %v842
  %v844 = vrot.slane %v839, %v843
  %846 = vmatprep.subr.mxu0 0.0
  %847 = vmatpush1.msra.mxu0 %v823
  %848 = vmatprep.subr.mxu0 0.0
  %849 = vmatpush1.msra.mxu0 %v824
  %850 = vmatprep.subr.mxu0 0.0
  %851 = vmatpush1.msra.mxu0 %v825
  %852 = vmatprep.subr.mxu0 0.0
  %853 = vmatpush1.msra.mxu0 %v826
  %854 = vmatprep.subr.mxu0 0.0
  %855 = vmatpush1.msra.mxu0 %v827
  %856 = vmatprep.subr.mxu0 0.0
  %857 = vmatpush1.msra.mxu0 %v828
  %858 = vmatprep.subr.mxu0 0.0
  %859 = vmatpush1.msra.mxu0 %v829
  %860 = vmatprep.subr.mxu0 0.0
  %861 = vmatpush1.msra.mxu0 %v830
  %862 = vmatprep.subr.mxu0 0.0
  %863 = vmatpush1.msra.mxu0 %v831
  %864 = vmatprep.subr.mxu0 0.0
  %865 = vmatpush1.msra.mxu0 %v832
  %866 = vmatprep.subr.mxu0 0.0
  %867 = vmatpush1.msra.mxu0 %v833
  %868 = vmatprep.subr.mxu0 0.0
  %869 = vmatpush1.msra.mxu0 %v834
  %870 = vmatprep.subr.mxu0 0.0
  %871 = vmatpush1.msra.mxu0 %v835
  %872 = vmatprep.subr.mxu0 0.0
  %873 = vmatpush1.msra.mxu0 %v836
  %874 = vmatprep.subr.mxu0 0.0
  %875 = vmatpush1.msra.mxu0 %v837
  %876 = vmatprep.subr.mxu0 0.0
  %877 = vmatpush1.msra.mxu0 %v838
  %878 = vmatprep.subr.mxu0 0.0
  %879 = vmatpush1.msra.mxu0 0.0
  %880 = vmatprep.subr.mxu0 0.0
  %881 = vmatpush1.msra.mxu0 0.0
  %882 = vmatprep.subr.mxu0 0.0
  %883 = vmatpush1.msra.mxu0 0.0
  %884 = vmatprep.subr.mxu0 0.0
  %885 = vmatpush1.msra.mxu0 0.0
  %886 = vmatprep.subr.mxu0 0.0
  %887 = vmatpush1.msra.mxu0 0.0
  %888 = vmatprep.subr.mxu0 0.0
  %889 = vmatpush1.msra.mxu0 0.0
  %890 = vmatprep.subr.mxu0 0.0
  %891 = vmatpush1.msra.mxu0 0.0
  %892 = vmatprep.subr.mxu0 0.0
  %893 = vmatpush1.msra.mxu0 0.0
  %894 = vmatprep.subr.mxu0 0.0
  %895 = vmatpush1.msra.mxu0 0.0
  %896 = vmatprep.subr.mxu0 0.0
  %897 = vmatpush1.msra.mxu0 0.0
  %898 = vmatprep.subr.mxu0 0.0
  %899 = vmatpush1.msra.mxu0 0.0
  %900 = vmatprep.subr.mxu0 0.0
  %901 = vmatpush1.msra.mxu0 0.0
  %902 = vmatprep.subr.mxu0 0.0
  %903 = vmatpush1.msra.mxu0 0.0
  %904 = vmatprep.subr.mxu0 0.0
  %905 = vmatpush1.msra.mxu0 0.0
  %906 = vmatprep.subr.mxu0 0.0
  %907 = vmatpush1.msra.mxu0 0.0
  %908 = vmatprep.subr.mxu0 0.0
  %909 = vmatpush1.msra.mxu0 0.0
  %910 = vmatprep.mubr.f32.mxu0 0.0
  %911 = vmatmul.mubr.f32.gmra.mrb[0].mxu0 %v665
  %v912 = vpop.f32.mrb[0].mxu0
  %v913 = vadd.f32 %v844, %v912
  %v914 = vpop.f32.mrb[0].mxu0
  %915 = vmatprep.mubr.f32.mxu0 0.0
  %916 = vmatmul.mubr.f32.gmra.mrb[0].mxu0 %v670
  %v917 = vpop.f32.mrb[0].mxu0
  %v918 = vadd.f32 %v844, %v917
  %v919 = vpop.f32.mrb[0].mxu0
  %920 = vmatprep.mubr.f32.mxu0 0.0
  %921 = vmatmul.mubr.f32.gmra.mrb[0].mxu0 %v675
  %v922 = vpop.f32.mrb[0].mxu0
  %v923 = vadd.f32 %v844, %v922
  %v924 = vpop.f32.mrb[0].mxu0
  %925 = vmatprep.mubr.f32.mxu0 0.0
  %926 = vmatmul.mubr.f32.gmra.mrb[0].mxu0 %v680
  %v927 = vpop.f32.mrb[0].mxu0
  %v928 = vadd.f32 %v844, %v927
  %v929 = vpop.f32.mrb[0].mxu0
  %930 = vmatprep.mubr.f32.mxu0 0.0
  %931 = vmatmul.mubr.f32.gmra.mrb[0].mxu0 %v685
  %v932 = vpop.f32.mrb[0].mxu0
  %v933 = vadd.f32 %v844, %v932
  %v934 = vpop.f32.mrb[0].mxu0
  %935 = vmatprep.mubr.f32.mxu0 0.0
  %936 = vmatmul.mubr.f32.gmra.mrb[0].mxu0 %v690
  %v937 = vpop.f32.mrb[0].mxu0
  %v938 = vadd.f32 %v844, %v937
  %v939 = vpop.f32.mrb[0].mxu0
  %940 = vmatprep.mubr.f32.mxu0 0.0
  %941 = vmatmul.mubr.f32.gmra.mrb[0].mxu0 %v695
  %v942 = vpop.f32.mrb[0].mxu0
  %v943 = vadd.f32 %v844, %v942
  %v944 = vpop.f32.mrb[0].mxu0
  %945 = vmatprep.mubr.f32.mxu0 0.0
  %946 = vmatmul.mubr.f32.gmra.mrb[0].mxu0 %v700
  %v947 = vpop.f32.mrb[0].mxu0
  %v948 = vadd.f32 %v844, %v947
  %v949 = vpop.f32.mrb[0].mxu0
  %950 = vmatprep.mubr.f32.mxu0 0.0
  %951 = vmatmul.mubr.f32.gmra.mrb[0].mxu0 %v705
  %v952 = vpop.f32.mrb[0].mxu0
  %v953 = vadd.f32 %v844, %v952
  %v954 = vpop.f32.mrb[0].mxu0
  %955 = vmatprep.mubr.f32.mxu0 0.0
  %956 = vmatmul.mubr.f32.gmra.mrb[0].mxu0 %v710
  %v957 = vpop.f32.mrb[0].mxu0
  %v958 = vadd.f32 %v844, %v957
  %v959 = vpop.f32.mrb[0].mxu0
  %960 = vmatprep.mubr.f32.mxu0 0.0
  %961 = vmatmul.mubr.f32.gmra.mrb[0].mxu0 %v715
  %v962 = vpop.f32.mrb[0].mxu0
  %v963 = vadd.f32 %v844, %v962
  %v964 = vpop.f32.mrb[0].mxu0
  %965 = vmatprep.mubr.f32.mxu0 0.0
  %966 = vmatmul.mubr.f32.gmra.mrb[0].mxu0 %v720
  %v967 = vpop.f32.mrb[0].mxu0
  %v968 = vadd.f32 %v844, %v967
  %v969 = vpop.f32.mrb[0].mxu0
  %970 = vmatprep.mubr.f32.mxu0 0.0
  %971 = vmatmul.mubr.f32.gmra.mrb[0].mxu0 %v725
  %v972 = vpop.f32.mrb[0].mxu0
  %v973 = vadd.f32 %v844, %v972
  %v974 = vpop.f32.mrb[0].mxu0
  %975 = vmatprep.mubr.f32.mxu0 0.0
  %976 = vmatmul.mubr.f32.gmra.mrb[0].mxu0 %v730
  %v977 = vpop.f32.mrb[0].mxu0
  %v978 = vadd.f32 %v844, %v977
  %v979 = vpop.f32.mrb[0].mxu0
  %980 = vmatprep.mubr.f32.mxu0 0.0
  %981 = vmatmul.mubr.f32.gmra.mrb[0].mxu0 %v735
  %v982 = vpop.f32.mrb[0].mxu0
  %v983 = vadd.f32 %v844, %v982
  %v984 = vpop.f32.mrb[0].mxu0
  %985 = vmatprep.mubr.f32.mxu0 0.0
  %986 = vmatmul.mubr.f32.gmra.mrb[0].mxu0 %v740
  %v987 = vpop.f32.mrb[0].mxu0
  %v988 = vadd.f32 %v844, %v987
  %v989 = vpop.f32.mrb[0].mxu0
  %990 = vmatprep.mubr.f32.mxu0 0.0
  %991 = vmatmul.mubr.f32.gmra.mrb[0].mxu0 %v745
  %v992 = vpop.f32.mrb[0].mxu0
  %v993 = vadd.f32 %v844, %v992
  %v994 = vpop.f32.mrb[0].mxu0
  %995 = vmatprep.mubr.f32.mxu0 0.0
  %996 = vmatmul.mubr.f32.gmra.mrb[0].mxu0 %v750
  %v997 = vpop.f32.mrb[0].mxu0
  %v998 = vadd.f32 %v844, %v997
  %v999 = vpop.f32.mrb[0].mxu0
  %1000 = vmatprep.mubr.f32.mxu0 0.0
  %1001 = vmatmul.mubr.f32.gmra.mrb[0].mxu0 %v755
  %v1002 = vpop.f32.mrb[0].mxu0
  %v1003 = vadd.f32 %v844, %v1002
  %v1004 = vpop.f32.mrb[0].mxu0
  %1005 = vmatprep.mubr.f32.mxu0 0.0
  %1006 = vmatmul.mubr.f32.gmra.mrb[0].mxu0 %v760
  %v1007 = vpop.f32.mrb[0].mxu0
  %v1008 = vadd.f32 %v844, %v1007
  %v1009 = vpop.f32.mrb[0].mxu0
  %1010 = vmatprep.mubr.f32.mxu0 0.0
  %1011 = vmatmul.mubr.f32.gmra.mrb[0].mxu0 %v765
  %v1012 = vpop.f32.mrb[0].mxu0
  %v1013 = vadd.f32 %v844, %v1012
  %v1014 = vpop.f32.mrb[0].mxu0
  %1015 = vmatprep.mubr.f32.mxu0 0.0
  %1016 = vmatmul.mubr.f32.gmra.mrb[0].mxu0 %v770
  %v1017 = vpop.f32.mrb[0].mxu0
  %v1018 = vadd.f32 %v844, %v1017
  %v1019 = vpop.f32.mrb[0].mxu0
  %1020 = vmatprep.mubr.f32.mxu0 0.0
  %1021 = vmatmul.mubr.f32.gmra.mrb[0].mxu0 %v775
  %v1022 = vpop.f32.mrb[0].mxu0
  %v1023 = vadd.f32 %v844, %v1022
  %v1024 = vpop.f32.mrb[0].mxu0
  %1025 = vmatprep.mubr.f32.mxu0 0.0
  %1026 = vmatmul.mubr.f32.gmra.mrb[0].mxu0 %v780
  %v1027 = vpop.f32.mrb[0].mxu0
  %v1028 = vadd.f32 %v844, %v1027
  %v1029 = vpop.f32.mrb[0].mxu0
  %1030 = vmatprep.mubr.f32.mxu0 0.0
  %1031 = vmatmul.mubr.f32.gmra.mrb[0].mxu0 %v785
  %v1032 = vpop.f32.mrb[0].mxu0
  %v1033 = vadd.f32 %v844, %v1032
  %v1034 = vpop.f32.mrb[0].mxu0
  %1035 = vmatprep.mubr.f32.mxu0 0.0
  %1036 = vmatmul.mubr.f32.gmra.mrb[0].mxu0 %v790
  %v1037 = vpop.f32.mrb[0].mxu0
  %v1038 = vadd.f32 %v844, %v1037
  %v1039 = vpop.f32.mrb[0].mxu0
  %1040 = vmatprep.mubr.f32.mxu0 0.0
  %1041 = vmatmul.mubr.f32.gmra.mrb[0].mxu0 %v795
  %v1042 = vpop.f32.mrb[0].mxu0
  %v1043 = vadd.f32 %v844, %v1042
  %v1044 = vpop.f32.mrb[0].mxu0
  %1045 = vmatprep.mubr.f32.mxu0 0.0
  %1046 = vmatmul.mubr.f32.gmra.mrb[0].mxu0 %v800
  %v1047 = vpop.f32.mrb[0].mxu0
  %v1048 = vadd.f32 %v844, %v1047
  %v1049 = vpop.f32.mrb[0].mxu0
  %1050 = vmatprep.mubr.f32.mxu0 0.0
  %1051 = vmatmul.mubr.f32.gmra.mrb[0].mxu0 %v805
  %v1052 = vpop.f32.mrb[0].mxu0
  %v1053 = vadd.f32 %v844, %v1052
  %v1054 = vpop.f32.mrb[0].mxu0
  %1055 = vmatprep.mubr.f32.mxu0 0.0
  %1056 = vmatmul.mubr.f32.gmra.mrb[0].mxu0 %v810
  %v1057 = vpop.f32.mrb[0].mxu0
  %v1058 = vadd.f32 %v844, %v1057
  %v1059 = vpop.f32.mrb[0].mxu0
  %1060 = vmatprep.mubr.f32.mxu0 0.0
  %1061 = vmatmul.mubr.f32.gmra.mrb[0].mxu0 %v815
  %v1062 = vpop.f32.mrb[0].mxu0
  %v1063 = vadd.f32 %v844, %v1062
  %v1064 = vpop.f32.mrb[0].mxu0
  %1065 = vmatprep.mubr.f32.mxu0 0.0
  %1066 = vmatmul.mubr.f32.gmra.mrb[0].mxu0 %v820
  %v1067 = vpop.f32.mrb[0].mxu0
  %v1068 = vadd.f32 %v844, %v1067
  %v1069 = vpop.f32.mrb[0].mxu0
  %1070 = vdwg.mxu0
  %v1071 = vmax.f32 %v913, 0.0
  %v1072 = vmax.f32 %v918, 0.0
  %v1073 = vmax.f32 %v923, 0.0
  %v1074 = vmax.f32 %v928, 0.0
  %v1075 = vmax.f32 %v933, 0.0
  %v1076 = vmax.f32 %v938, 0.0
  %v1077 = vmax.f32 %v943, 0.0
  %v1078 = vmax.f32 %v948, 0.0
  %v1079 = vmax.f32 %v953, 0.0
  %v1080 = vmax.f32 %v958, 0.0
  %v1081 = vmax.f32 %v963, 0.0
  %v1082 = vmax.f32 %v968, 0.0
  %v1083 = vmax.f32 %v973, 0.0
  %v1084 = vmax.f32 %v978, 0.0
  %v1085 = vmax.f32 %v983, 0.0
  %v1086 = vmax.f32 %v988, 0.0
  %v1087 = vmax.f32 %v993, 0.0
  %v1088 = vmax.f32 %v998, 0.0
  %v1089 = vmax.f32 %v1003, 0.0
  %v1090 = vmax.f32 %v1008, 0.0
  %v1091 = vmax.f32 %v1013, 0.0
  %v1092 = vmax.f32 %v1018, 0.0
  %v1093 = vmax.f32 %v1023, 0.0
  %v1094 = vmax.f32 %v1028, 0.0
  %v1095 = vmax.f32 %v1033, 0.0
  %v1096 = vmax.f32 %v1038, 0.0
  %v1097 = vmax.f32 %v1043, 0.0
  %v1098 = vmax.f32 %v1048, 0.0
  %v1099 = vmax.f32 %v1053, 0.0
  %v1100 = vmax.f32 %v1058, 0.0
  %v1101 = vmax.f32 %v1063, 0.0
  %v1102 = vmax.f32 %v1068, 0.0
  %v1103 = vlaneseq
  %v1104 = vshrl.u32 %v1103, 7
  %v1105 = vadd.s32 %v1104, 8
  %v1106 = vadd.s32 %v1104, 16
  %v1107 = vadd.s32 %v1104, 24
  %v1108 = vadd.s32 %v1104, 32
  %v1109 = vadd.s32 %v1104, 40
  %v1110 = vadd.s32 %v1104, 48
  %v1111 = vadd.s32 %v1104, 56
  %v1112 = vadd.s32 %v1104, 64
  %v1113 = vadd.s32 %v1104, 72
  %v1114 = vadd.s32 %v1104, 80
  %v1115 = vadd.s32 %v1104, 88
  %v1116 = vadd.s32 %v1104, 96
  %v1117 = vadd.s32 %v1104, 104
  %v1118 = vadd.s32 %v1104, 112
  %v1119 = vadd.s32 %v1104, 120
  %v1120 = vadd.s32 %v1104, 128
  %v1121 = vadd.s32 %v1104, 136
  %v1122 = vadd.s32 %v1104, 144
  %v1123 = vadd.s32 %v1104, 152
  %v1124 = vadd.s32 %v1104, 160
  %v1125 = vadd.s32 %v1104, 168
  %v1126 = vadd.s32 %v1104, 176
  %v1127 = vadd.s32 %v1104, 184
  %v1128 = vadd.s32 %v1104, 192
  %v1129 = vadd.s32 %v1104, 200
  %v1130 = vadd.s32 %v1104, 208
  %v1131 = vadd.s32 %v1104, 216
  %v1132 = vadd.s32 %v1104, 224
  %v1133 = vadd.s32 %v1104, 232
  %v1134 = vadd.s32 %v1104, 240
  %v1135 = vadd.s32 %v1104, 248
  %vm1136 = vcmp.lt.s32.totalorder %v1104, 256
  %vm1137 = vcmp.lt.s32.totalorder %v1105, 256
  %vm1138 = vcmp.lt.s32.totalorder %v1106, 256
  %vm1139 = vcmp.lt.s32.totalorder %v1107, 256
  %vm1140 = vcmp.lt.s32.totalorder %v1108, 256
  %vm1141 = vcmp.lt.s32.totalorder %v1109, 256
  %vm1142 = vcmp.lt.s32.totalorder %v1110, 256
  %vm1143 = vcmp.lt.s32.totalorder %v1111, 256
  %vm1144 = vcmp.lt.s32.totalorder %v1112, 256
  %vm1145 = vcmp.lt.s32.totalorder %v1113, 256
  %vm1146 = vcmp.lt.s32.totalorder %v1114, 256
  %vm1147 = vcmp.lt.s32.totalorder %v1115, 256
  %vm1148 = vcmp.lt.s32.totalorder %v1116, 256
  %vm1149 = vcmp.lt.s32.totalorder %v1117, 256
  %vm1150 = vcmp.lt.s32.totalorder %v1118, 256
  %vm1151 = vcmp.lt.s32.totalorder %v1119, 256
  %vm1152 = vcmp.lt.s32.totalorder %v1120, 256
  %vm1153 = vcmp.lt.s32.totalorder %v1121, 256
  %vm1154 = vcmp.lt.s32.totalorder %v1122, 256
  %vm1155 = vcmp.lt.s32.totalorder %v1123, 256
  %vm1156 = vcmp.lt.s32.totalorder %v1124, 256
  %vm1157 = vcmp.lt.s32.totalorder %v1125, 256
  %vm1158 = vcmp.lt.s32.totalorder %v1126, 256
  %vm1159 = vcmp.lt.s32.totalorder %v1127, 256
  %vm1160 = vcmp.lt.s32.totalorder %v1128, 256
  %vm1161 = vcmp.lt.s32.totalorder %v1129, 256
  %vm1162 = vcmp.lt.s32.totalorder %v1130, 256
  %vm1163 = vcmp.lt.s32.totalorder %v1131, 256
  %vm1164 = vcmp.lt.s32.totalorder %v1132, 256
  %vm1165 = vcmp.lt.s32.totalorder %v1133, 256
  %vm1166 = vcmp.lt.s32.totalorder %v1134, 256
  %vm1167 = vcmp.lt.s32.totalorder %v1135, 256
  %v1168 = vsel %vm1136, %v1071, 0.0
  %v1169 = vsel %vm1137, %v1072, 0.0
  %v1170 = vsel %vm1138, %v1073, 0.0
  %v1171 = vsel %vm1139, %v1074, 0.0
  %v1172 = vsel %vm1140, %v1075, 0.0
  %v1173 = vsel %vm1141, %v1076, 0.0
  %v1174 = vsel %vm1142, %v1077, 0.0
  %v1175 = vsel %vm1143, %v1078, 0.0
  %v1176 = vsel %vm1144, %v1079, 0.0
  %v1177 = vsel %vm1145, %v1080, 0.0
  %v1178 = vsel %vm1146, %v1081, 0.0
  %v1179 = vsel %vm1147, %v1082, 0.0
  %v1180 = vsel %vm1148, %v1083, 0.0
  %v1181 = vsel %vm1149, %v1084, 0.0
  %v1182 = vsel %vm1150, %v1085, 0.0
  %v1183 = vsel %vm1151, %v1086, 0.0
  %v1184 = vsel %vm1152, %v1087, 0.0
  %v1185 = vsel %vm1153, %v1088, 0.0
  %v1186 = vsel %vm1154, %v1089, 0.0
  %v1187 = vsel %vm1155, %v1090, 0.0
  %v1188 = vsel %vm1156, %v1091, 0.0
  %v1189 = vsel %vm1157, %v1092, 0.0
  %v1190 = vsel %vm1158, %v1093, 0.0
  %v1191 = vsel %vm1159, %v1094, 0.0
  %v1192 = vsel %vm1160, %v1095, 0.0
  %v1193 = vsel %vm1161, %v1096, 0.0
  %v1194 = vsel %vm1162, %v1097, 0.0
  %v1195 = vsel %vm1163, %v1098, 0.0
  %v1196 = vsel %vm1164, %v1099, 0.0
  %v1197 = vsel %vm1165, %v1100, 0.0
  %v1198 = vsel %vm1166, %v1101, 0.0
  %v1199 = vsel %vm1167, %v1102, 0.0
  %v1200 = vld [vmem:[%s4] sm:$0xff]
  %v1201 = vld [vmem:[%s4 + $0x8] sm:$0xff]
  %1202 = vmatprep.subr.mxu0 0.0
  %1203 = vmatpush1.msra.mxu0 %v1168
  %1204 = vmatprep.subr.mxu0 0.0
  %1205 = vmatpush1.msra.mxu0 %v1169
  %1206 = vmatprep.subr.mxu0 0.0
  %1207 = vmatpush1.msra.mxu0 %v1170
  %1208 = vmatprep.subr.mxu0 0.0
  %1209 = vmatpush1.msra.mxu0 %v1171
  %1210 = vmatprep.subr.mxu0 0.0
  %1211 = vmatpush1.msra.mxu0 %v1172
  %1212 = vmatprep.subr.mxu0 0.0
  %1213 = vmatpush1.msra.mxu0 %v1173
  %1214 = vmatprep.subr.mxu0 0.0
  %1215 = vmatpush1.msra.mxu0 %v1174
  %1216 = vmatprep.subr.mxu0 0.0
  %1217 = vmatpush1.msra.mxu0 %v1175
  %1218 = vmatprep.subr.mxu0 0.0
  %1219 = vmatpush1.msra.mxu0 %v1176
  %1220 = vmatprep.subr.mxu0 0.0
  %1221 = vmatpush1.msra.mxu0 %v1177
  %1222 = vmatprep.subr.mxu0 0.0
  %1223 = vmatpush1.msra.mxu0 %v1178
  %1224 = vmatprep.subr.mxu0 0.0
  %1225 = vmatpush1.msra.mxu0 %v1179
  %1226 = vmatprep.subr.mxu0 0.0
  %1227 = vmatpush1.msra.mxu0 %v1180
  %1228 = vmatprep.subr.mxu0 0.0
  %1229 = vmatpush1.msra.mxu0 %v1181
  %1230 = vmatprep.subr.mxu0 0.0
  %1231 = vmatpush1.msra.mxu0 %v1182
  %1232 = vmatprep.subr.mxu0 0.0
  %1233 = vmatpush1.msra.mxu0 %v1183
  %1234 = vmatprep.subr.mxu0 0.0
  %1235 = vmatpush1.msra.mxu0 %v1184
  %1236 = vmatprep.subr.mxu0 0.0
  %1237 = vmatpush1.msra.mxu0 %v1185
  %1238 = vmatprep.subr.mxu0 0.0
  %1239 = vmatpush1.msra.mxu0 %v1186
  %1240 = vmatprep.subr.mxu0 0.0
  %1241 = vmatpush1.msra.mxu0 %v1187
  %1242 = vmatprep.subr.mxu0 0.0
  %1243 = vmatpush1.msra.mxu0 %v1188
  %1244 = vmatprep.subr.mxu0 0.0
  %1245 = vmatpush1.msra.mxu0 %v1189
  %1246 = vmatprep.subr.mxu0 0.0
  %1247 = vmatpush1.msra.mxu0 %v1190
  %1248 = vmatprep.subr.mxu0 0.0
  %1249 = vmatpush1.msra.mxu0 %v1191
  %1250 = vmatprep.subr.mxu0 0.0
  %1251 = vmatpush1.msra.mxu0 %v1192
  %1252 = vmatprep.subr.mxu0 0.0
  %1253 = vmatpush1.msra.mxu0 %v1193
  %1254 = vmatprep.subr.mxu0 0.0
  %1255 = vmatpush1.msra.mxu0 %v1194
  %1256 = vmatprep.subr.mxu0 0.0
  %1257 = vmatpush1.msra.mxu0 %v1195
  %1258 = vmatprep.subr.mxu0 0.0
  %1259 = vmatpush1.msra.mxu0 %v1196
  %1260 = vmatprep.subr.mxu0 0.0
  %1261 = vmatpush1.msra.mxu0 %v1197
  %1262 = vmatprep.subr.mxu0 0.0
  %1263 = vmatpush1.msra.mxu0 %v1198
  %1264 = vmatprep.subr.mxu0 0.0
  %1265 = vmatpush1.msra.mxu0 %v1199
  %1266 = vmatprep.mubr.f32.mxu0 %v1201
  %1267 = vmatmul.mubr.f32.gmra.mrb[0].mxu0 %v1200
  %v1268 = vpop.f32.mrb[0].mxu0
  %v1269 = vadd.f32 0.0, %v1268
  %v1270 = vpop.f32.mrb[0].mxu0
  %1271 = vdwg.mxu0
  %1272 = vst [vmem:[%s5] sm:$0xff] %v1269
  // Predicated region
  $region22: #{subgcn_feature.1} parent=0 // pred_check
    _
  $region23: #{subgcn_feature.1} parent=0 // pred_check_branch
    %1274 = sbr.rel (0) target = $region25
  $region24: #{subgcn_feature.1} parent=0 // pred_region
    _
  $region25: #{subgcn_feature.1} parent=0 // pred_fallthru
    _
  // Predicated region
  $region26: #{subgcn_feature.1} parent=0 // pred_check
    _
  $region27: #{subgcn_feature.1} parent=0 // pred_check_branch
    %1276 = sbr.rel (0) target = $region29
  $region28: #{subgcn_feature.1} parent=0 // pred_region
    _
  $region29: #{subgcn_feature.1} parent=0 // pred_fallthru
    _

</llo_original>
